<compile_context>
chip_gen: v5e
topology: v5e:2x2
jax: 0.10.0
libtpu: 0.0.40
codegen_flags: <defaults>
</compile_context>

<pallas_src>
import math

import jax
import jax.numpy as jnp
from jax.experimental import pallas as pl
from jax.experimental.pallas import tpu as pltpu


def relu_kernel(x_ref, o_ref):
    # Elementwise max(x, 0) on the VPU over the whole VMEM tile.
    x = x_ref[...]
    o_ref[...] = jnp.maximum(x, jnp.zeros_like(x))


def _relu_2d(x2, tile_rows=None):
    """Run the ReLU kernel over a 2D array, row-tiled with double buffering."""
    R, C = x2.shape
    tr = R if tile_rows is None else tile_rows
    grid = (R // tr,)
    return pl.pallas_call(
        relu_kernel,
        out_shape=jax.ShapeDtypeStruct((R, C), x2.dtype),
        grid=grid,
        in_specs=[pl.BlockSpec((tr, C), lambda i: (i, 0))],
        out_specs=pl.BlockSpec((tr, C), lambda i: (i, 0)),
        compiler_params=pltpu.CompilerParams(
            # Row tiles are independent -> lets the grid shard across both
            # TensorCores on v7x; harmless no-op on v5e/v6e.
            dimension_semantics=("parallel",),
        ),
    )(x2)


# Cap each VMEM buffer at ~2 MiB so (input + output) x double-buffering stays
# around 8 MiB -- comfortably under the scoped VMEM defaults on v5e (16 MiB)
# and v6e / v7x (32 MiB), and far from v7x's 64 MiB physical limit.
_MAX_TILE_BYTES = 2 * 1024 * 1024
# Full-array single-block fallback limit (tiny / awkward shapes only).
_MAX_FULL_BLOCK_BYTES = 4 * 1024 * 1024


def _pick_tile_rows(R, lane, itemsize, sublane):
    """Largest power-of-two multiple of `sublane` dividing R that fits VMEM."""
    max_rows = max(sublane, min(1024, _MAX_TILE_BYTES // (lane * itemsize)))
    t = sublane
    cands = []
    while t <= max_rows:
        cands.append(t)
        t *= 2
    for c in reversed(cands):
        if R % c == 0:
            return c
    return None


def relu(x):
    """Pallas TPU ReLU. Accepts any rank; preserves shape and dtype."""
    orig_shape = x.shape
    n = int(math.prod(orig_shape)) if x.ndim > 0 else 1
    if n == 0:
        return x

    itemsize = jnp.dtype(x.dtype).itemsize
    sublane = max(8, 32 // itemsize)  # 8 for f32, 16 for bf16, 32 for int8

    # Lane-dense 2D view: lanes = largest of {1024, 512, 256, 128} dividing the
    # element count -> unmasked, full-width vector stores.
    lane = None
    for cand in (1024, 512, 256, 128):
        if n % cand == 0:
            lane = cand
            break

    if lane is None:
        # Odd-sized (tiny / irregular) input, e.g. the 2x2 example: a single
        # full-extent block is legal for any shape and cheap at these sizes.
        out = _relu_2d(x.reshape(1, n))
        return out.reshape(orig_shape)

    R = n // lane
    x2 = x.reshape(R, lane)
    tile_rows = _pick_tile_rows(R, lane, itemsize, sublane)

    if tile_rows is not None:
        # Row-tiled grid: Pallas double-buffers, overlapping the HBM->VMEM DMA
        # of tile i+1 with VPU compute / writeback of tile i.
        out = _relu_2d(x2, tile_rows)
    elif R * lane * itemsize <= _MAX_FULL_BLOCK_BYTES:
        # Small enough for one full-array block (exempt from the (8,128) rule).
        out = _relu_2d(x2)
    else:
        # Large but awkward row count: pad rows so a standard tile divides
        # exactly (no ragged tail), then slice the padding back off.
        tr = max(sublane, min(512, _MAX_TILE_BYTES // (lane * itemsize)))
        R_pad = ((R + tr - 1) // tr) * tr
        x2p = jnp.pad(x2, ((0, R_pad - R), (0, 0)))
        out = _relu_2d(x2p, tr)[:R]

    return out.reshape(orig_shape)


if __name__ == "__main__":
    # Mirror the PyTorch example input exactly: [[1, -0.5], [-1, 3]].
    x_example = jnp.array([[1.0, -0.5], [-1.0, 3.0]], dtype=jnp.float32)
    y = relu(x_example)
    jax.block_until_ready(y)
    assert y.shape == x_example.shape and y.dtype == x_example.dtype
    assert jnp.allclose(y, jnp.maximum(x_example, 0.0)), y

    key = jax.random.PRNGKey(0)
    k1, k2, k3 = jax.random.split(key, 3)

    # Small NCHW-style input (2*4*16*16 = 2048 elements) -> lane-dense path.
    x_small = jax.random.normal(k1, (2, 4, 16, 16), dtype=jnp.float32)
    y_small = relu(x_small)
    jax.block_until_ready(y_small)
    assert jnp.allclose(y_small, jnp.maximum(x_small, 0.0))

    # Odd element count -> full-extent fallback block.
    x_odd = jax.random.normal(k2, (3, 5, 7), dtype=jnp.float32)
    y_odd = relu(x_odd)
    jax.block_until_ready(y_odd)
    assert jnp.allclose(y_odd, jnp.maximum(x_odd, 0.0))

    # Larger array exercising the multi-step, double-buffered row-tiled grid
    # ((2048, 1024) f32 -> lane=1024, tile_rows=512, grid=(4,)).
    x_big = jax.random.normal(k3, (2048, 1024), dtype=jnp.float32)
    y_big = relu(x_big)
    jax.block_until_ready(y_big)
    assert jnp.allclose(y_big, jnp.maximum(x_big, 0.0))

    print("KERNEL_OK")
</pallas_src>

<mosaic_0001>
module attributes {stable_mosaic.version = 11 : i64} {
  func.func @relu_kernel(%arg0: i32, %arg1: memref<1x4xf32, #tpu.memory_space<vmem>>, %arg2: memref<1x4xf32, #tpu.memory_space<vmem>>) attributes {dimension_semantics = [#tpu.dimension_semantics<parallel>], iteration_bounds = array<i64: 1>, scalar_prefetch = 0 : i64, scratch_operands = 0 : i64, tpu.core_type = #tpu.core_type<tc>, window_params = [{transform_indices = @transform_0, window_bounds = array<i64: 1, 4>}, {transform_indices = @transform_1, window_bounds = array<i64: 1, 4>}]} {
    %c0 = arith.constant 0 : index
    %c0_0 = arith.constant 0 : index
    %0 = vector.load %arg1[%c0, %c0_0] : memref<1x4xf32, #tpu.memory_space<vmem>>, vector<1x4xf32>
    %cst = arith.constant 0.000000e+00 : f32
    %1 = vector.broadcast %cst : f32 to vector<1x4xf32>
    %2 = arith.maximumf %0, %1 : vector<1x4xf32>
    %c0_1 = arith.constant 0 : index
    %c0_2 = arith.constant 0 : index
    %3 = vector.load %arg2[%c0_1, %c0_2] : memref<1x4xf32, #tpu.memory_space<vmem>>, vector<1x4xf32>
    tpu.vector_store %arg2[%c0_1, %c0_2], %2 {strides = array<i32>} : memref<1x4xf32, #tpu.memory_space<vmem>>, vector<1x4xf32>,
    return
  }
  func.func @transform_0(%arg0: i32) -> (i32, i32) {
    %c0_i32 = arith.constant 0 : i32
    %c0_i32_0 = arith.constant 0 : i32
    return %arg0, %c0_i32 : i32, i32
  }
  func.func @transform_1(%arg0: i32) -> (i32, i32) {
    %c0_i32 = arith.constant 0 : i32
    %c0_i32_0 = arith.constant 0 : i32
    return %arg0, %c0_i32 : i32, i32
  }
}

</mosaic_0001>

<llo_original>
// kernel: tpu_custom_call.1
$region0: #{tpu_custom_call.1}
  #allocation0 [shape = 'u32[]', space=smem, size = 0x4, offset = 0x4, fixed_abs, tag = 'smem constant byte address 0x4 - core index']
  #allocation1 [shape = 'u32[72,128]{1,0:T(1,128)}', space=vmem, size = 0x9000, scoped, tag = 'internal scratch']
  %s0 = inlined_call_operand.hbm [shape: f32[1,4], index: 0, kind: input, shape index: {}]
  %s1 = inlined_call_operand.hbm [shape: f32[1,4], index: 1, kind: output, shape index: {}]
  %s2 = sld [smem:[#allocation0]]
  $region18: #{tpu_custom_call.1} parent=0
    _
  %s4 = ssub.s32 1, %s2
  %s5 = scalar_select 0, %s4, %s2
  $region1: #{tpu_custom_call.1} parent=0
    #allocation2 [shape = 'u8[512]{0}', space=vmem, size = 0x400, scoped, tag = 'input window, operand 0, single buffered']
    #allocation3 [shape = 's32[1]{0}', space=sflag, size = 0x4, scoped, tag = 'scoped memory for tpu_custom_call.1']
    #allocation4 [shape = 's32[1]{0}', space=sflag, size = 0x4, scoped, tag = 'scoped memory for tpu_custom_call.1']
    #allocation5 [shape = 'u8[512]{0}', space=vmem, size = 0x400, scoped, tag = 'output window, operand 0, single buffered']
    %6 = vsyncpa [#allocation3], 0
    %7 = vsyncpa [#allocation4], 0
    // Predicated region
    $region2: #{tpu_custom_call.1} parent=1 // pred_check
      _
    $region3: #{tpu_custom_call.1} parent=1 // pred_check_branch
      %9 = sbr.rel (0) target = $region5
    $region4: #{tpu_custom_call.1} parent=1 // pred_region
      %11 = vsyncadd [#allocation3], 0
      %s13 = sshll.u32 %s0, 4
      %s14 = int_to_ptr.hbm [resolvable:$true] %s13
      %s15 = sshll.u32 [#allocation2], 4
      %s16 = int_to_ptr.vmem [resolvable:$true] %s15
      %18 = dma.hbm_to_vmem [thread:$0]  %s14, 16, %s16, [#allocation3]
    $region5: #{tpu_custom_call.1} parent=1 // pred_fallthru
      _
    // Predicated region
    $region6: #{tpu_custom_call.1} parent=1 // pred_check
      _
    $region7: #{tpu_custom_call.1} parent=1 // pred_check_branch
      %20 = sbr.rel (0) target = $region9
    $region8: #{tpu_custom_call.1} parent=1 // pred_region
      %22 = dma.done [#allocation3], 16
    $region9: #{tpu_custom_call.1} parent=1 // pred_fallthru
      _
    %v23 = vld [vmem:[#allocation2] sm:$0x1]
    %v24 = vmax.f32 %v23, 0.0
    %vm25 = vcmask 24576
    %26 = vst.msk [vmem:[#allocation5] sm:$0x1] %vm25, %v24
    // Predicated region
    $region10: #{tpu_custom_call.1} parent=1 // pred_check
      _
    $region11: #{tpu_custom_call.1} parent=1 // pred_check_branch
      %28 = sbr.rel (0) target = $region13
    $region12: #{tpu_custom_call.1} parent=1 // pred_region
      %30 = vsyncadd [#allocation4], 0
      %s32 = sshll.u32 [#allocation5], 4
      %s33 = int_to_ptr.vmem [resolvable:$true] %s32
      %s34 = sshll.u32 %s1, 4
      %s35 = int_to_ptr.hbm [resolvable:$true] %s34
      %37 = dma.vmem_to_hbm [thread:$0]  %s33, 16, %s35, [#allocation4]
    $region13: #{tpu_custom_call.1} parent=1 // pred_fallthru
      _
    // Predicated region
    $region14: #{tpu_custom_call.1} parent=1 // pred_check
      _
    $region15: #{tpu_custom_call.1} parent=1 // pred_check_branch
      %39 = sbr.rel (0) target = $region17
    $region16: #{tpu_custom_call.1} parent=1 // pred_region
      %41 = dma.done [#allocation4], 16
    $region17: #{tpu_custom_call.1} parent=1 // pred_fallthru
      _
    %42 = vsyncpa [#allocation3], 1
    %43 = vsyncpa [#allocation4], 1

</llo_original>
